<compile_context>
chip_gen: v5e
topology: v5e:2x2
jax: 0.10.0
libtpu: 0.0.40
codegen_flags: <defaults>
</compile_context>

<pallas_src>
import jax
import jax.numpy as jnp
from jax.experimental import pallas as pl
from jax.experimental.pallas import tpu as pltpu

_LANE = 128
_SUBLANE = 8

_PARAM_ORDER = ("w1", "b1", "w2", "b2", "w3", "b3",
                "w4", "b4", "w5", "b5", "w6", "b6")


def _round_up(n, m):
    return ((n + m - 1) // m) * m


def _cdiv(a, b):
    return -(-a // b)


def _pad2d(a, shape):
    pads = tuple((0, t - s) for s, t in zip(a.shape, shape))
    if all(p == (0, 0) for p in pads):
        return a
    return jnp.pad(a, pads)


def _tpu_generation():
    """Best-effort chip generation ("v5e"/"v6e"/"v7x") from the device kind."""
    try:
        kind = jax.devices()[0].device_kind.lower()
    except Exception:
        return None
    if "v7" in kind:
        return "v7x"
    if "v6" in kind:
        return "v6e"
    if "v5 lite" in kind or "v5e" in kind or "v5litepod" in kind:
        return "v5e"
    return None


def _vmem_capacity_bytes():
    try:
        return int(pltpu.get_tpu_info().vmem_capacity_bytes)
    except Exception:
        return 64 * 1024 * 1024  # conservative (v7x-sized) fallback


def _supports_single_buffered_blocks():
    """Feature-detect BlockSpec(pipeline_mode=pl.Buffered(1)) without compiling."""
    try:
        pl.BlockSpec((_SUBLANE, _LANE), lambda i: (0, 0),
                     pipeline_mode=pl.Buffered(1))
        return True
    except (TypeError, AttributeError):
        return False


def _autoencoder_kernel(
    x_ref,
    w1_ref, b1_ref, w2_ref, b2_ref, w3_ref, b3_ref,   # encoder params
    w4_ref, b4_ref, w5_ref, b5_ref, w6_ref, b6_ref,   # decoder params
    z_ref, recon_ref,
):
    # Narrow MXU operand dtype (bf16 when x is bf16); all matmuls accumulate in
    # f32 via preferred_element_type.  Bias add / ReLU / tanh stay in f32 on the
    # VPU/EUP.
    act_dtype = x_ref.dtype
    x = x_ref[...]

    # ---------------- encoder ----------------
    h = jnp.dot(x, w1_ref[...], preferred_element_type=jnp.float32) + b1_ref[...]
    h = jnp.maximum(h, 0.0).astype(act_dtype)                 # ReLU
    h = jnp.dot(h, w2_ref[...], preferred_element_type=jnp.float32) + b2_ref[...]
    h = jnp.maximum(h, 0.0).astype(act_dtype)                 # ReLU
    z = jnp.dot(h, w3_ref[...], preferred_element_type=jnp.float32) + b3_ref[...]
    z_ref[...] = z.astype(z_ref.dtype)

    # ---------------- decoder ----------------
    z_a = z.astype(act_dtype)                                 # narrow MXU operand
    h = jnp.dot(z_a, w4_ref[...], preferred_element_type=jnp.float32) + b4_ref[...]
    h = jnp.maximum(h, 0.0).astype(act_dtype)                 # ReLU
    h = jnp.dot(h, w5_ref[...], preferred_element_type=jnp.float32) + b5_ref[...]
    h = jnp.maximum(h, 0.0).astype(act_dtype)                 # ReLU
    r = jnp.dot(h, w6_ref[...], preferred_element_type=jnp.float32) + b6_ref[...]
    recon_ref[...] = jnp.tanh(r).astype(recon_ref.dtype)      # Tanh


def simple_autoencoder_forward(x, params, *, tile_b=None, weight_dtype=None,
                               vmem_budget_bytes=None):
    """Full autoencoder forward pass in one Pallas kernel.

    x      : [B, input_size] float32 or bfloat16
    params : dict with w1..w6 (shape [in, out]) and b1..b6 (shape [1, out])
    returns: (z [B, z_size], recon [B, input_size]) in x.dtype
    """
    B, input_size = x.shape
    hidden_size = params["w1"].shape[1]
    z_size = params["w3"].shape[1]
    x_itemsize = jnp.dtype(x.dtype).itemsize

    gen = _tpu_generation()
    capacity = _vmem_capacity_bytes()
    if vmem_budget_bytes is None:
        # ~0.7x physical VMEM: ~90 MiB on v5e/v6e (128 MiB), ~44 MiB on v7x (64 MiB).
        vmem_budget_bytes = int(0.7 * capacity)

    use_buffered_weights = _supports_single_buffered_blocks()
    weight_buf = 1 if use_buffered_weights else 2

    # Lane-pad every feature dimension up to a multiple of 128 (padding is exact:
    # padded weight rows/cols and biases are zero, relu(0)=0, outputs sliced).
    in_p = _round_up(input_size, _LANE)
    hid_p = _round_up(hidden_size, _LANE)
    z_p = _round_up(z_size, _LANE)

    padded_shapes = {
        "w1": (in_p, hid_p), "b1": (1, hid_p),
        "w2": (hid_p, hid_p), "b2": (1, hid_p),
        "w3": (hid_p, z_p),  "b3": (1, z_p),
        "w4": (z_p, hid_p),  "b4": (1, hid_p),
        "w5": (hid_p, hid_p), "b5": (1, hid_p),
        "w6": (hid_p, in_p), "b6": (1, in_p),
    }
    weight_elems = sum(s[0] * s[1] for s in padded_shapes.values())

    # ----- explicit "weights don't fit" handling: auto bf16 cast if needed -----
    param_dtype = jnp.dtype(params["w1"].dtype)
    if weight_dtype is None:
        resident_f = weight_buf * weight_elems * param_dtype.itemsize
        weight_dtype = param_dtype if resident_f <= vmem_budget_bytes // 2 else jnp.bfloat16
    weight_dtype = jnp.dtype(weight_dtype)

    padded_params = {
        k: _pad2d(params[k].astype(weight_dtype), padded_shapes[k])
        for k in _PARAM_ORDER
    }
    weight_bytes = weight_elems * weight_dtype.itemsize

    # ------------- batch tiling (generation-aware, divisor-aware) -------------
    def _vmem_estimate(tb):
        # double-buffered pipelined tiles: x in, z + recon out
        io = 2 * tb * (in_p + z_p + in_p) * x_itemsize
        # in-kernel f32 intermediates (two hidden, z, recon pre-activation), one copy
        act = tb * (2 * hid_p + z_p + in_p) * 4
        return io + act + weight_buf * weight_bytes

    tile_cap = {"v5e": 256, "v6e": 512, "v7x": 256}.get(gen, 256)

    if tile_b is None:
        n_tiles = _cdiv(B, tile_cap)
        if gen == "v7x" and B >= 2 * _LANE:
            # v7x has 2 TensorCores; keep both busy via the "parallel" batch axis.
            n_tiles = max(n_tiles, 2)
        tb = _round_up(_cdiv(B, n_tiles), _SUBLANE)
        # Prefer a 128-row multiple (MXU M-fill) when it adds no extra batch padding.
        tb128 = _round_up(tb, _LANE)
        if tb128 <= tile_cap and _round_up(B, tb128) == _round_up(B, tb):
            tb = tb128
        # Shrink only if the (correctly counted) VMEM estimate exceeds the budget.
        while tb > _SUBLANE and _vmem_estimate(tb) > vmem_budget_bytes:
            tb = max(_SUBLANE, _round_up(tb // 2, _SUBLANE))
        tile_b = tb
    else:
        tile_b = max(_SUBLANE,
                     _round_up(min(int(tile_b), _round_up(B, _SUBLANE)), _SUBLANE))

    # Pad the batch so every block is full (padded rows compute garbage through
    # relu/tanh but are sliced off below, never read back).
    B_p = _round_up(B, tile_b)
    x_p = _pad2d(x, (B_p, in_p))
    grid = (B_p // tile_b,)

    def row_map(i):
        return (i, 0)

    def const_map(i):
        return (0, 0)

    if use_buffered_weights:
        # Constant-index weight/bias blocks: single buffering (no pointless 2x VMEM).
        param_specs = [
            pl.BlockSpec(padded_shapes[k], const_map, pipeline_mode=pl.Buffered(1))
            for k in _PARAM_ORDER
        ]
    else:
        param_specs = [pl.BlockSpec(padded_shapes[k], const_map)
                       for k in _PARAM_ORDER]

    out_shapes = (
        jax.ShapeDtypeStruct((B_p, z_p), x.dtype),
        jax.ShapeDtypeStruct((B_p, in_p), x.dtype),
    )

    # Advisory cost estimate so XLA can schedule around the fused kernel.
    flops = 2 * B * (2 * input_size * hidden_size
                     + 2 * hidden_size * hidden_size
                     + 2 * hidden_size * z_size)
    transcendentals = B * input_size  # tanh on the reconstruction
    bytes_accessed = (x_p.size * x_itemsize + weight_bytes
                      + B_p * z_p * x_itemsize + B_p * in_p * x_itemsize)
    cost = pl.CostEstimate(flops=flops, transcendentals=transcendentals,
                           bytes_accessed=bytes_accessed)

    fn = pl.pallas_call(
        _autoencoder_kernel,
        out_shape=out_shapes,
        grid_spec=pltpu.PrefetchScalarGridSpec(
            num_scalar_prefetch=0,
            grid=grid,
            in_specs=[pl.BlockSpec((tile_b, in_p), row_map)] + param_specs,
            out_specs=[
                pl.BlockSpec((tile_b, z_p), row_map),
                pl.BlockSpec((tile_b, in_p), row_map),
            ],
        ),
        compiler_params=pltpu.CompilerParams(
            dimension_semantics=("parallel",),
            vmem_limit_bytes=int(vmem_budget_bytes),
        ),
        cost_estimate=cost,
    )
    z_pad, recon_pad = fn(x_p, *[padded_params[k] for k in _PARAM_ORDER])

    return z_pad[:B, :z_size], recon_pad[:B, :input_size]


def init_params(key, input_size, hidden_size, z_size, dtype=jnp.float32):
    """PyTorch-style uniform(-1/sqrt(fan_in), +1/sqrt(fan_in)) init, [in, out] layout."""
    dims = [
        (input_size, hidden_size),   # encoder L1
        (hidden_size, hidden_size),  # encoder L2
        (hidden_size, z_size),       # encoder L3
        (z_size, hidden_size),       # decoder L4
        (hidden_size, hidden_size),  # decoder L5
        (hidden_size, input_size),   # decoder L6
    ]
    params = {}
    keys = jax.random.split(key, 2 * len(dims))
    for idx, (fan_in, fan_out) in enumerate(dims):
        bound = 1.0 / jnp.sqrt(jnp.float32(fan_in))
        w = jax.random.uniform(keys[2 * idx], (fan_in, fan_out),
                               minval=-bound, maxval=bound, dtype=dtype)
        b = jax.random.uniform(keys[2 * idx + 1], (1, fan_out),
                               minval=-bound, maxval=bound, dtype=dtype)
        params[f"w{idx + 1}"] = w
        params[f"b{idx + 1}"] = b
    return params


def reference_forward(x, params):
    """Plain-JAX reference mirroring the PyTorch forward exactly."""
    h = jnp.maximum(x @ params["w1"] + params["b1"], 0.0)
    h = jnp.maximum(h @ params["w2"] + params["b2"], 0.0)
    z = h @ params["w3"] + params["b3"]
    h = jnp.maximum(z @ params["w4"] + params["b4"], 0.0)
    h = jnp.maximum(h @ params["w5"] + params["b5"], 0.0)
    recon = jnp.tanh(h @ params["w6"] + params["b6"])
    return z, recon


if __name__ == "__main__":
    # Small demo shapes consistent with the module's forward: x is [batch, input_size].
    # (At these tiny sizes the grid is length 1; real batches give grid > 1.)
    batch = 8
    input_size = 64
    hidden_size = 32
    z_size = 16

    key = jax.random.PRNGKey(0)
    k_x, k_p = jax.random.split(key)
    x = jax.random.normal(k_x, (batch, input_size), dtype=jnp.float32)
    params = init_params(k_p, input_size, hidden_size, z_size)

    z, recon = simple_autoencoder_forward(x, params)
    z = jax.block_until_ready(z)
    recon = jax.block_until_ready(recon)

    z_ref, recon_ref = reference_forward(x, params)
    assert z.shape == (batch, z_size)
    assert recon.shape == (batch, input_size)
    assert jnp.allclose(z, z_ref, atol=1e-5, rtol=1e-5)
    assert jnp.allclose(recon, recon_ref, atol=1e-5, rtol=1e-5)

    print("KERNEL_OK")
</pallas_src>

<mosaic_0001>
module attributes {stable_mosaic.version = 11 : i64} {
  func.func @_autoencoder_kernel(%arg0: i32, %arg1: memref<8x128xf32, #tpu.memory_space<vmem>>, %arg2: memref<128x128xf32, #tpu.memory_space<vmem>>, %arg3: memref<1x128xf32, #tpu.memory_space<vmem>>, %arg4: memref<128x128xf32, #tpu.memory_space<vmem>>, %arg5: memref<1x128xf32, #tpu.memory_space<vmem>>, %arg6: memref<128x128xf32, #tpu.memory_space<vmem>>, %arg7: memref<1x128xf32, #tpu.memory_space<vmem>>, %arg8: memref<128x128xf32, #tpu.memory_space<vmem>>, %arg9: memref<1x128xf32, #tpu.memory_space<vmem>>, %arg10: memref<128x128xf32, #tpu.memory_space<vmem>>, %arg11: memref<1x128xf32, #tpu.memory_space<vmem>>, %arg12: memref<128x128xf32, #tpu.memory_space<vmem>>, %arg13: memref<1x128xf32, #tpu.memory_space<vmem>>, %arg14: memref<8x128xf32, #tpu.memory_space<vmem>>, %arg15: memref<8x128xf32, #tpu.memory_space<vmem>>) attributes {dimension_semantics = [#tpu.dimension_semantics<parallel>], iteration_bounds = array<i64: 1>, scalar_prefetch = 0 : i64, scratch_operands = 0 : i64, tpu.core_type = #tpu.core_type<tc>, window_params = [{transform_indices = @transform_0, window_bounds = array<i64: 8, 128>}, {pipeline_mode = #tpu.pipeline_mode<synchronous>, transform_indices = @transform_1, window_bounds = array<i64: 128, 128>}, {pipeline_mode = #tpu.pipeline_mode<synchronous>, transform_indices = @transform_2, window_bounds = array<i64: 1, 128>}, {pipeline_mode = #tpu.pipeline_mode<synchronous>, transform_indices = @transform_3, window_bounds = array<i64: 128, 128>}, {pipeline_mode = #tpu.pipeline_mode<synchronous>, transform_indices = @transform_4, window_bounds = array<i64: 1, 128>}, {pipeline_mode = #tpu.pipeline_mode<synchronous>, transform_indices = @transform_5, window_bounds = array<i64: 128, 128>}, {pipeline_mode = #tpu.pipeline_mode<synchronous>, transform_indices = @transform_6, window_bounds = array<i64: 1, 128>}, {pipeline_mode = #tpu.pipeline_mode<synchronous>, transform_indices = @transform_7, window_bounds = array<i64: 128, 128>}, {pipeline_mode = #tpu.pipeline_mode<synchronous>, transform_indices = @transform_8, window_bounds = array<i64: 1, 128>}, {pipeline_mode = #tpu.pipeline_mode<synchronous>, transform_indices = @transform_9, window_bounds = array<i64: 128, 128>}, {pipeline_mode = #tpu.pipeline_mode<synchronous>, transform_indices = @transform_10, window_bounds = array<i64: 1, 128>}, {pipeline_mode = #tpu.pipeline_mode<synchronous>, transform_indices = @transform_11, window_bounds = array<i64: 128, 128>}, {pipeline_mode = #tpu.pipeline_mode<synchronous>, transform_indices = @transform_12, window_bounds = array<i64: 1, 128>}, {transform_indices = @transform_13, window_bounds = array<i64: 8, 128>}, {transform_indices = @transform_14, window_bounds = array<i64: 8, 128>}]} {
    %c0 = arith.constant 0 : index
    %c0_0 = arith.constant 0 : index
    %0 = vector.load %arg1[%c0, %c0_0] : memref<8x128xf32, #tpu.memory_space<vmem>>, vector<8x128xf32>
    %c0_1 = arith.constant 0 : index
    %c0_2 = arith.constant 0 : index
    %1 = vector.load %arg2[%c0_1, %c0_2] : memref<128x128xf32, #tpu.memory_space<vmem>>, vector<128x128xf32>
    %cst = arith.constant dense<0.000000e+00> : vector<8x128xf32>
    %2 = tpu.matmul %0, %1, %cst {dimension_numbers = #tpu.dot_dimension_numbers<[1], [0], [0], [1], [0, 0, 1, 1], [], []>} : vector<8x128xf32>, vector<128x128xf32>, vector<8x128xf32> -> vector<8x128xf32>
    %c0_3 = arith.constant 0 : index
    %c0_4 = arith.constant 0 : index
    %3 = vector.load %arg3[%c0_3, %c0_4] : memref<1x128xf32, #tpu.memory_space<vmem>>, vector<1x128xf32>
    %4 = vector.broadcast %3 : vector<1x128xf32> to vector<8x128xf32>
    %5 = arith.addf %2, %4 : vector<8x128xf32>
    %cst_5 = arith.constant 0.000000e+00 : f32
    %6 = vector.broadcast %cst_5 : f32 to vector<8x128xf32>
    %7 = arith.maximumf %5, %6 : vector<8x128xf32>
    %c0_6 = arith.constant 0 : index
    %c0_7 = arith.constant 0 : index
    %8 = vector.load %arg4[%c0_6, %c0_7] : memref<128x128xf32, #tpu.memory_space<vmem>>, vector<128x128xf32>
    %cst_8 = arith.constant dense<0.000000e+00> : vector<8x128xf32>
    %9 = tpu.matmul %7, %8, %cst_8 {dimension_numbers = #tpu.dot_dimension_numbers<[1], [0], [0], [1], [0, 0, 1, 1], [], []>} : vector<8x128xf32>, vector<128x128xf32>, vector<8x128xf32> -> vector<8x128xf32>
    %c0_9 = arith.constant 0 : index
    %c0_10 = arith.constant 0 : index
    %10 = vector.load %arg5[%c0_9, %c0_10] : memref<1x128xf32, #tpu.memory_space<vmem>>, vector<1x128xf32>
    %11 = vector.broadcast %10 : vector<1x128xf32> to vector<8x128xf32>
    %12 = arith.addf %9, %11 : vector<8x128xf32>
    %cst_11 = arith.constant 0.000000e+00 : f32
    %13 = vector.broadcast %cst_11 : f32 to vector<8x128xf32>
    %14 = arith.maximumf %12, %13 : vector<8x128xf32>
    %c0_12 = arith.constant 0 : index
    %c0_13 = arith.constant 0 : index
    %15 = vector.load %arg6[%c0_12, %c0_13] : memref<128x128xf32, #tpu.memory_space<vmem>>, vector<128x128xf32>
    %cst_14 = arith.constant dense<0.000000e+00> : vector<8x128xf32>
    %16 = tpu.matmul %14, %15, %cst_14 {dimension_numbers = #tpu.dot_dimension_numbers<[1], [0], [0], [1], [0, 0, 1, 1], [], []>} : vector<8x128xf32>, vector<128x128xf32>, vector<8x128xf32> -> vector<8x128xf32>
    %c0_15 = arith.constant 0 : index
    %c0_16 = arith.constant 0 : index
    %17 = vector.load %arg7[%c0_15, %c0_16] : memref<1x128xf32, #tpu.memory_space<vmem>>, vector<1x128xf32>
    %18 = vector.broadcast %17 : vector<1x128xf32> to vector<8x128xf32>
    %19 = arith.addf %16, %18 : vector<8x128xf32>
    %c0_17 = arith.constant 0 : index
    %c0_18 = arith.constant 0 : index
    %20 = vector.load %arg14[%c0_17, %c0_18] : memref<8x128xf32, #tpu.memory_space<vmem>>, vector<8x128xf32>
    tpu.vector_store %arg14[%c0_17, %c0_18], %19 {strides = array<i32>} : memref<8x128xf32, #tpu.memory_space<vmem>>, vector<8x128xf32>,
    %c0_19 = arith.constant 0 : index
    %c0_20 = arith.constant 0 : index
    %21 = vector.load %arg8[%c0_19, %c0_20] : memref<128x128xf32, #tpu.memory_space<vmem>>, vector<128x128xf32>
    %cst_21 = arith.constant dense<0.000000e+00> : vector<8x128xf32>
    %22 = tpu.matmul %19, %21, %cst_21 {dimension_numbers = #tpu.dot_dimension_numbers<[1], [0], [0], [1], [0, 0, 1, 1], [], []>} : vector<8x128xf32>, vector<128x128xf32>, vector<8x128xf32> -> vector<8x128xf32>
    %c0_22 = arith.constant 0 : index
    %c0_23 = arith.constant 0 : index
    %23 = vector.load %arg9[%c0_22, %c0_23] : memref<1x128xf32, #tpu.memory_space<vmem>>, vector<1x128xf32>
    %24 = vector.broadcast %23 : vector<1x128xf32> to vector<8x128xf32>
    %25 = arith.addf %22, %24 : vector<8x128xf32>
    %cst_24 = arith.constant 0.000000e+00 : f32
    %26 = vector.broadcast %cst_24 : f32 to vector<8x128xf32>
    %27 = arith.maximumf %25, %26 : vector<8x128xf32>
    %c0_25 = arith.constant 0 : index
    %c0_26 = arith.constant 0 : index
    %28 = vector.load %arg10[%c0_25, %c0_26] : memref<128x128xf32, #tpu.memory_space<vmem>>, vector<128x128xf32>
    %cst_27 = arith.constant dense<0.000000e+00> : vector<8x128xf32>
    %29 = tpu.matmul %27, %28, %cst_27 {dimension_numbers = #tpu.dot_dimension_numbers<[1], [0], [0], [1], [0, 0, 1, 1], [], []>} : vector<8x128xf32>, vector<128x128xf32>, vector<8x128xf32> -> vector<8x128xf32>
    %c0_28 = arith.constant 0 : index
    %c0_29 = arith.constant 0 : index
    %30 = vector.load %arg11[%c0_28, %c0_29] : memref<1x128xf32, #tpu.memory_space<vmem>>, vector<1x128xf32>
    %31 = vector.broadcast %30 : vector<1x128xf32> to vector<8x128xf32>
    %32 = arith.addf %29, %31 : vector<8x128xf32>
    %cst_30 = arith.constant 0.000000e+00 : f32
    %33 = vector.broadcast %cst_30 : f32 to vector<8x128xf32>
    %34 = arith.maximumf %32, %33 : vector<8x128xf32>
    %c0_31 = arith.constant 0 : index
    %c0_32 = arith.constant 0 : index
    %35 = vector.load %arg12[%c0_31, %c0_32] : memref<128x128xf32, #tpu.memory_space<vmem>>, vector<128x128xf32>
    %cst_33 = arith.constant dense<0.000000e+00> : vector<8x128xf32>
    %36 = tpu.matmul %34, %35, %cst_33 {dimension_numbers = #tpu.dot_dimension_numbers<[1], [0], [0], [1], [0, 0, 1, 1], [], []>} : vector<8x128xf32>, vector<128x128xf32>, vector<8x128xf32> -> vector<8x128xf32>
    %c0_34 = arith.constant 0 : index
    %c0_35 = arith.constant 0 : index
    %37 = vector.load %arg13[%c0_34, %c0_35] : memref<1x128xf32, #tpu.memory_space<vmem>>, vector<1x128xf32>
    %38 = vector.broadcast %37 : vector<1x128xf32> to vector<8x128xf32>
    %39 = arith.addf %36, %38 : vector<8x128xf32>
    %40 = math.tanh %39 : vector<8x128xf32>
    %c0_36 = arith.constant 0 : index
    %c0_37 = arith.constant 0 : index
    %41 = vector.load %arg15[%c0_36, %c0_37] : memref<8x128xf32, #tpu.memory_space<vmem>>, vector<8x128xf32>
    tpu.vector_store %arg15[%c0_36, %c0_37], %40 {strides = array<i32>} : memref<8x128xf32, #tpu.memory_space<vmem>>, vector<8x128xf32>,
    return
  }
  func.func @transform_0(%arg0: i32) -> (i32, i32) {
    %c0_i32 = arith.constant 0 : i32
    %c0_i32_0 = arith.constant 0 : i32
    return %arg0, %c0_i32 : i32, i32
  }
  func.func @transform_1(%arg0: i32) -> (i32, i32) {
    %c0_i32 = arith.constant 0 : i32
    %c0_i32_0 = arith.constant 0 : i32
    %c0_i32_1 = arith.constant 0 : i32
    return %c0_i32, %c0_i32_0 : i32, i32
  }
  func.func @transform_2(%arg0: i32) -> (i32, i32) {
    %c0_i32 = arith.constant 0 : i32
    %c0_i32_0 = arith.constant 0 : i32
    %c0_i32_1 = arith.constant 0 : i32
    return %c0_i32, %c0_i32_0 : i32, i32
  }
  func.func @transform_3(%arg0: i32) -> (i32, i32) {
    %c0_i32 = arith.constant 0 : i32
    %c0_i32_0 = arith.constant 0 : i32
    %c0_i32_1 = arith.constant 0 : i32
    return %c0_i32, %c0_i32_0 : i32, i32
  }
  func.func @transform_4(%arg0: i32) -> (i32, i32) {
    %c0_i32 = arith.constant 0 : i32
    %c0_i32_0 = arith.constant 0 : i32
    %c0_i32_1 = arith.constant 0 : i32
    return %c0_i32, %c0_i32_0 : i32, i32
  }
  func.func @transform_5(%arg0: i32) -> (i32, i32) {
    %c0_i32 = arith.constant 0 : i32
    %c0_i32_0 = arith.constant 0 : i32
    %c0_i32_1 = arith.constant 0 : i32
    return %c0_i32, %c0_i32_0 : i32, i32
  }
  func.func @transform_6(%arg0: i32) -> (i32, i32) {
    %c0_i32 = arith.constant 0 : i32
    %c0_i32_0 = arith.constant 0 : i32
    %c0_i32_1 = arith.constant 0 : i32
    return %c0_i32, %c0_i32_0 : i32, i32
  }
  func.func @transform_7(%arg0: i32) -> (i32, i32) {
    %c0_i32 = arith.constant 0 : i32
    %c0_i32_0 = arith.constant 0 : i32
    %c0_i32_1 = arith.constant 0 : i32
    return %c0_i32, %c0_i32_0 : i32, i32
  }
  func.func @transform_8(%arg0: i32) -> (i32, i32) {
    %c0_i32 = arith.constant 0 : i32
    %c0_i32_0 = arith.constant 0 : i32
    %c0_i32_1 = arith.constant 0 : i32
    return %c0_i32, %c0_i32_0 : i32, i32
  }
  func.func @transform_9(%arg0: i32) -> (i32, i32) {
    %c0_i32 = arith.constant 0 : i32
    %c0_i32_0 = arith.constant 0 : i32
    %c0_i32_1 = arith.constant 0 : i32
    return %c0_i32, %c0_i32_0 : i32, i32
  }
  func.func @transform_10(%arg0: i32) -> (i32, i32) {
    %c0_i32 = arith.constant 0 : i32
    %c0_i32_0 = arith.constant 0 : i32
    %c0_i32_1 = arith.constant 0 : i32
    return %c0_i32, %c0_i32_0 : i32, i32
  }
  func.func @transform_11(%arg0: i32) -> (i32, i32) {
    %c0_i32 = arith.constant 0 : i32
    %c0_i32_0 = arith.constant 0 : i32
    %c0_i32_1 = arith.constant 0 : i32
    return %c0_i32, %c0_i32_0 : i32, i32
  }
  func.func @transform_12(%arg0: i32) -> (i32, i32) {
    %c0_i32 = arith.constant 0 : i32
    %c0_i32_0 = arith.constant 0 : i32
    %c0_i32_1 = arith.constant 0 : i32
    return %c0_i32, %c0_i32_0 : i32, i32
  }
  func.func @transform_13(%arg0: i32) -> (i32, i32) {
    %c0_i32 = arith.constant 0 : i32
    %c0_i32_0 = arith.constant 0 : i32
    return %arg0, %c0_i32 : i32, i32
  }
  func.func @transform_14(%arg0: i32) -> (i32, i32) {
    %c0_i32 = arith.constant 0 : i32
    %c0_i32_0 = arith.constant 0 : i32
    return %arg0, %c0_i32 : i32, i32
  }
}

</mosaic_0001>

<llo_original>
// kernel: tpu_custom_call.1
$region0: #{tpu_custom_call.1}
  #allocation0 [shape = 'u32[]', space=smem, size = 0x4, offset = 0x4, fixed_abs, tag = 'smem constant byte address 0x4 - core index']
  #allocation1 [shape = 'u32[72,128]{1,0:T(1,128)}', space=vmem, size = 0x9000, scoped, tag = 'internal scratch']
  %s0 = inlined_call_operand.hbm [shape: f32[8,128], index: 0, kind: input, shape index: {}]
  %s1 = inlined_call_operand.hbm [shape: f32[128,128], index: 1, kind: input, shape index: {}]
  %s2 = inlined_call_operand.vmem [shape: f32[1,128], index: 2, kind: input, shape index: {}]
  %s3 = inlined_call_operand.hbm [shape: f32[128,128], index: 3, kind: input, shape index: {}]
  %s4 = inlined_call_operand.vmem [shape: f32[1,128], index: 4, kind: input, shape index: {}]
  %s5 = inlined_call_operand.hbm [shape: f32[128,128], index: 5, kind: input, shape index: {}]
  %s6 = inlined_call_operand.vmem [shape: f32[1,128], index: 6, kind: input, shape index: {}]
  %s7 = inlined_call_operand.hbm [shape: f32[128,128], index: 7, kind: input, shape index: {}]
  %s8 = inlined_call_operand.vmem [shape: f32[1,128], index: 8, kind: input, shape index: {}]
  %s9 = inlined_call_operand.hbm [shape: f32[128,128], index: 9, kind: input, shape index: {}]
  %s10 = inlined_call_operand.vmem [shape: f32[1,128], index: 10, kind: input, shape index: {}]
  %s11 = inlined_call_operand.hbm [shape: f32[128,128], index: 11, kind: input, shape index: {}]
  %s12 = inlined_call_operand.vmem [shape: f32[1,128], index: 12, kind: input, shape index: {}]
  %s13 = inlined_call_operand.hbm [shape: f32[8,128], index: 13, kind: output, shape index: {0}]
  %s14 = inlined_call_operand.hbm [shape: f32[8,128], index: 14, kind: output, shape index: {1}]
  %15 = xla_tuple %s13, %s14
  %s16 = sld [smem:[#allocation0]]
  $region98: #{tpu_custom_call.1} parent=0
    _
  %s18 = ssub.s32 1, %s16
  %s19 = scalar_select 0, %s18, %s16
  $region1: #{tpu_custom_call.1} parent=0
    #allocation2 [shape = 'u8[4096]{0}', space=vmem, size = 0x1000, scoped, tag = 'input window, operand 0, single buffered']
    #allocation3 [shape = 's32[1]{0}', space=sflag, size = 0x4, scoped, tag = 'scoped memory for tpu_custom_call.1']
    #allocation4 [shape = 's32[1]{0}', space=sflag, size = 0x4, scoped, tag = 'scoped memory for tpu_custom_call.1']
    #allocation5 [shape = 'u8[65536]{0}', space=vmem, size = 0x10000, scoped, tag = 'input window, operand 1, single buffered']
    #allocation6 [shape = 's32[1]{0}', space=sflag, size = 0x4, scoped, tag = 'scoped memory for tpu_custom_call.1']
    #allocation7 [shape = 'u8[65536]{0}', space=vmem, size = 0x10000, scoped, tag = 'input window, operand 3, single buffered']
    #allocation8 [shape = 'u8[65536]{0}', space=vmem, size = 0x10000, scoped, tag = 'input window, operand 5, single buffered']
    #allocation9 [shape = 's32[1]{0}', space=sflag, size = 0x4, scoped, tag = 'scoped memory for tpu_custom_call.1']
    #allocation10 [shape = 'u8[65536]{0}', space=vmem, size = 0x10000, scoped, tag = 'input window, operand 7, single buffered']
    #allocation11 [shape = 'u8[65536]{0}', space=vmem, size = 0x10000, scoped, tag = 'input window, operand 9, single buffered']
    #allocation12 [shape = 's32[1]{0}', space=sflag, size = 0x4, scoped, tag = 'scoped memory for tpu_custom_call.1']
    #allocation13 [shape = 'u8[65536]{0}', space=vmem, size = 0x10000, scoped, tag = 'input window, operand 11, single buffered']
    #allocation14 [shape = 'u8[4096]{0}', space=vmem, size = 0x1000, scoped, tag = 'output window, operand 0, single buffered']
    #allocation15 [shape = 'u8[4096]{0}', space=vmem, size = 0x1000, scoped, tag = 'output window, operand 1, single buffered']
    #allocation16 [shape = 's32[1]{0}', space=sflag, size = 0x4, scoped, tag = 'scoped memory for tpu_custom_call.1']
    %20 = vsyncpa [#allocation3], 0
    %21 = vsyncpa [#allocation6], 0
    %22 = vsyncpa [#allocation9], 0
    %23 = vsyncpa [#allocation12], 0
    %24 = vsyncpa [#allocation4], 0
    %25 = vsyncpa [#allocation16], 0
    // Predicated region
    $region2: #{tpu_custom_call.1} parent=1 // pred_check
      _
    $region3: #{tpu_custom_call.1} parent=1 // pred_check_branch
      %27 = sbr.rel (0) target = $region5
    $region4: #{tpu_custom_call.1} parent=1 // pred_region
      %29 = vsyncadd [#allocation3], 0
      %s31 = sshll.u32 %s0, 4
      %s32 = int_to_ptr.hbm [resolvable:$true] %s31
      %s33 = sshll.u32 [#allocation2], 4
      %s34 = int_to_ptr.vmem [resolvable:$true] %s33
      %36 = dma.hbm_to_vmem [thread:$0]  %s32, 128, %s34, [#allocation3]
    $region5: #{tpu_custom_call.1} parent=1 // pred_fallthru
      _
    // Predicated region
    $region6: #{tpu_custom_call.1} parent=1 // pred_check
      _
    $region7: #{tpu_custom_call.1} parent=1 // pred_check_branch
      %38 = sbr.rel (0) target = $region9
    $region8: #{tpu_custom_call.1} parent=1 // pred_region
      %40 = vsyncadd [#allocation6], 0
      %s41 = sshll.u32 %s1, 4
      %s42 = int_to_ptr.hbm [resolvable:$true] %s41
      %s43 = sshll.u32 [#allocation5], 4
      %s44 = int_to_ptr.vmem [resolvable:$true] %s43
      %49 = dma.hbm_to_vmem [thread:$0]  %s42, 2048, %s44, [#allocation6], 128, 128, 8
    $region9: #{tpu_custom_call.1} parent=1 // pred_fallthru
      _
    // Predicated region
    $region10: #{tpu_custom_call.1} parent=1 // pred_check
      _
    $region11: #{tpu_custom_call.1} parent=1 // pred_check_branch
      %51 = sbr.rel (0) target = $region13
    $region12: #{tpu_custom_call.1} parent=1 // pred_region
      _
    $region13: #{tpu_custom_call.1} parent=1 // pred_fallthru
      _
    // Predicated region
    $region14: #{tpu_custom_call.1} parent=1 // pred_check
      _
    $region15: #{tpu_custom_call.1} parent=1 // pred_check_branch
      %53 = sbr.rel (0) target = $region17
    $region16: #{tpu_custom_call.1} parent=1 // pred_region
      %55 = vsyncadd [#allocation6], 0
      %s56 = sshll.u32 %s3, 4
      %s57 = int_to_ptr.hbm [resolvable:$true] %s56
      %s58 = sshll.u32 [#allocation7], 4
      %s59 = int_to_ptr.vmem [resolvable:$true] %s58
      %64 = dma.hbm_to_vmem [thread:$0]  %s57, 2048, %s59, [#allocation6], 128, 128, 8
    $region17: #{tpu_custom_call.1} parent=1 // pred_fallthru
      _
    // Predicated region
    $region18: #{tpu_custom_call.1} parent=1 // pred_check
      _
    $region19: #{tpu_custom_call.1} parent=1 // pred_check_branch
      %66 = sbr.rel (0) target = $region21
    $region20: #{tpu_custom_call.1} parent=1 // pred_region
      _
    $region21: #{tpu_custom_call.1} parent=1 // pred_fallthru
      _
    // Predicated region
    $region22: #{tpu_custom_call.1} parent=1 // pred_check
      _
    $region23: #{tpu_custom_call.1} parent=1 // pred_check_branch
      %68 = sbr.rel (0) target = $region25
    $region24: #{tpu_custom_call.1} parent=1 // pred_region
      %70 = vsyncadd [#allocation9], 0
      %s71 = sshll.u32 %s5, 4
      %s72 = int_to_ptr.hbm [resolvable:$true] %s71
      %s73 = sshll.u32 [#allocation8], 4
      %s74 = int_to_ptr.vmem [resolvable:$true] %s73
      %79 = dma.hbm_to_vmem [thread:$0]  %s72, 2048, %s74, [#allocation9], 128, 128, 8
    $region25: #{tpu_custom_call.1} parent=1 // pred_fallthru
      _
    // Predicated region
    $region26: #{tpu_custom_call.1} parent=1 // pred_check
      _
    $region27: #{tpu_custom_call.1} parent=1 // pred_check_branch
      %81 = sbr.rel (0) target = $region29
    $region28: #{tpu_custom_call.1} parent=1 // pred_region
      _
    $region29: #{tpu_custom_call.1} parent=1 // pred_fallthru
      _
    // Predicated region
    $region30: #{tpu_custom_call.1} parent=1 // pred_check
      _
    $region31: #{tpu_custom_call.1} parent=1 // pred_check_branch
      %83 = sbr.rel (0) target = $region33
    $region32: #{tpu_custom_call.1} parent=1 // pred_region
      %85 = vsyncadd [#allocation9], 0
      %s86 = sshll.u32 %s7, 4
      %s87 = int_to_ptr.hbm [resolvable:$true] %s86
      %s88 = sshll.u32 [#allocation10], 4
      %s89 = int_to_ptr.vmem [resolvable:$true] %s88
      %94 = dma.hbm_to_vmem [thread:$0]  %s87, 2048, %s89, [#allocation9], 128, 128, 8
    $region33: #{tpu_custom_call.1} parent=1 // pred_fallthru
      _
    // Predicated region
    $region34: #{tpu_custom_call.1} parent=1 // pred_check
      _
    $region35: #{tpu_custom_call.1} parent=1 // pred_check_branch
      %96 = sbr.rel (0) target = $region37
    $region36: #{tpu_custom_call.1} parent=1 // pred_region
      _
    $region37: #{tpu_custom_call.1} parent=1 // pred_fallthru
      _
    // Predicated region
    $region38: #{tpu_custom_call.1} parent=1 // pred_check
      _
    $region39: #{tpu_custom_call.1} parent=1 // pred_check_branch
      %98 = sbr.rel (0) target = $region41
    $region40: #{tpu_custom_call.1} parent=1 // pred_region
      %100 = vsyncadd [#allocation12], 0
      %s101 = sshll.u32 %s9, 4
      %s102 = int_to_ptr.hbm [resolvable:$true] %s101
      %s103 = sshll.u32 [#allocation11], 4
      %s104 = int_to_ptr.vmem [resolvable:$true] %s103
      %109 = dma.hbm_to_vmem [thread:$0]  %s102, 2048, %s104, [#allocation12], 128, 128, 8
    $region41: #{tpu_custom_call.1} parent=1 // pred_fallthru
      _
    // Predicated region
    $region42: #{tpu_custom_call.1} parent=1 // pred_check
      _
    $region43: #{tpu_custom_call.1} parent=1 // pred_check_branch
      %111 = sbr.rel (0) target = $region45
    $region44: #{tpu_custom_call.1} parent=1 // pred_region
      _
    $region45: #{tpu_custom_call.1} parent=1 // pred_fallthru
      _
    // Predicated region
    $region46: #{tpu_custom_call.1} parent=1 // pred_check
      _
    $region47: #{tpu_custom_call.1} parent=1 // pred_check_branch
      %113 = sbr.rel (0) target = $region49
    $region48: #{tpu_custom_call.1} parent=1 // pred_region
      %115 = vsyncadd [#allocation12], 0
      %s116 = sshll.u32 %s11, 4
      %s117 = int_to_ptr.hbm [resolvable:$true] %s116
      %s118 = sshll.u32 [#allocation13], 4
      %s119 = int_to_ptr.vmem [resolvable:$true] %s118
      %124 = dma.hbm_to_vmem [thread:$0]  %s117, 2048, %s119, [#allocation12], 128, 128, 8
    $region49: #{tpu_custom_call.1} parent=1 // pred_fallthru
      _
    // Predicated region
    $region50: #{tpu_custom_call.1} parent=1 // pred_check
      _
    $region51: #{tpu_custom_call.1} parent=1 // pred_check_branch
      %126 = sbr.rel (0) target = $region53
    $region52: #{tpu_custom_call.1} parent=1 // pred_region
      _
    $region53: #{tpu_custom_call.1} parent=1 // pred_fallthru
      _
    // Predicated region
    $region54: #{tpu_custom_call.1} parent=1 // pred_check
      _
    $region55: #{tpu_custom_call.1} parent=1 // pred_check_branch
      %128 = sbr.rel (0) target = $region57
    $region56: #{tpu_custom_call.1} parent=1 // pred_region
      %130 = dma.done [#allocation3], 128
    $region57: #{tpu_custom_call.1} parent=1 // pred_fallthru
      _
    // Predicated region
    $region58: #{tpu_custom_call.1} parent=1 // pred_check
      _
    $region59: #{tpu_custom_call.1} parent=1 // pred_check_branch
      %132 = sbr.rel (0) target = $region61
    $region60: #{tpu_custom_call.1} parent=1 // pred_region
      %134 = dma.done [#allocation6], 2048
    $region61: #{tpu_custom_call.1} parent=1 // pred_fallthru
      _
    // Predicated region
    $region62: #{tpu_custom_call.1} parent=1 // pred_check
      _
    $region63: #{tpu_custom_call.1} parent=1 // pred_check_branch
      %136 = sbr.rel (0) target = $region65
    $region64: #{tpu_custom_call.1} parent=1 // pred_region
      %138 = dma.done [#allocation6], 2048
    $region65: #{tpu_custom_call.1} parent=1 // pred_fallthru
      _
    // Predicated region
    $region66: #{tpu_custom_call.1} parent=1 // pred_check
      _
    $region67: #{tpu_custom_call.1} parent=1 // pred_check_branch
      %140 = sbr.rel (0) target = $region69
    $region68: #{tpu_custom_call.1} parent=1 // pred_region
      %142 = dma.done [#allocation9], 2048
    $region69: #{tpu_custom_call.1} parent=1 // pred_fallthru
      _
    // Predicated region
    $region70: #{tpu_custom_call.1} parent=1 // pred_check
      _
    $region71: #{tpu_custom_call.1} parent=1 // pred_check_branch
      %144 = sbr.rel (0) target = $region73
    $region72: #{tpu_custom_call.1} parent=1 // pred_region
      %146 = dma.done [#allocation9], 2048
    $region73: #{tpu_custom_call.1} parent=1 // pred_fallthru
      _
    // Predicated region
    $region74: #{tpu_custom_call.1} parent=1 // pred_check
      _
    $region75: #{tpu_custom_call.1} parent=1 // pred_check_branch
      %148 = sbr.rel (0) target = $region77
    $region76: #{tpu_custom_call.1} parent=1 // pred_region
      %150 = dma.done [#allocation12], 2048
    $region77: #{tpu_custom_call.1} parent=1 // pred_fallthru
      _
    // Predicated region
    $region78: #{tpu_custom_call.1} parent=1 // pred_check
      _
    $region79: #{tpu_custom_call.1} parent=1 // pred_check_branch
      %152 = sbr.rel (0) target = $region81
    $region80: #{tpu_custom_call.1} parent=1 // pred_region
      %154 = dma.done [#allocation12], 2048
    $region81: #{tpu_custom_call.1} parent=1 // pred_fallthru
      _
    %v155 = vld [vmem:[#allocation2] sm:$0xff]
    %v156 = vld [vmem:[#allocation5] sm:$0xff]
    %v157 = vld [vmem:[#allocation5 + $0x8] sm:$0xff]
    %v158 = vld [vmem:[#allocation5 + $0x10] sm:$0xff]
    %v159 = vld [vmem:[#allocation5 + $0x18] sm:$0xff]
    %v160 = vld [vmem:[#allocation5 + $0x20] sm:$0xff]
    %v161 = vld [vmem:[#allocation5 + $0x28] sm:$0xff]
    %v162 = vld [vmem:[#allocation5 + $0x30] sm:$0xff]
    %v163 = vld [vmem:[#allocation5 + $0x38] sm:$0xff]
    %v164 = vld [vmem:[#allocation5 + $0x40] sm:$0xff]
    %v165 = vld [vmem:[#allocation5 + $0x48] sm:$0xff]
    %v166 = vld [vmem:[#allocation5 + $0x50] sm:$0xff]
    %v167 = vld [vmem:[#allocation5 + $0x58] sm:$0xff]
    %v168 = vld [vmem:[#allocation5 + $0x60] sm:$0xff]
    %v169 = vld [vmem:[#allocation5 + $0x68] sm:$0xff]
    %v170 = vld [vmem:[#allocation5 + $0x70] sm:$0xff]
    %v171 = vld [vmem:[#allocation5 + $0x78] sm:$0xff]
    %v172 = vld [vmem:[%s2] sm:$0x1]
    %v174 = vperm.slane %v172, 0
    %176 = vmatpush.msra.mxu0 %v171
    %177 = vmatpush.msra.mxu0 %v170
    %178 = vmatpush.msra.mxu0 %v169
    %179 = vmatpush.msra.mxu0 %v168
    %180 = vmatpush.msra.mxu0 %v167
    %181 = vmatpush.msra.mxu0 %v166
    %182 = vmatpush.msra.mxu0 %v165
    %183 = vmatpush.msra.mxu0 %v164
    %184 = vmatpush.msra.mxu0 %v163
    %185 = vmatpush.msra.mxu0 %v162
    %186 = vmatpush.msra.mxu0 %v161
    %187 = vmatpush.msra.mxu0 %v160
    %188 = vmatpush.msra.mxu0 %v159
    %189 = vmatpush.msra.mxu0 %v158
    %190 = vmatpush.msra.mxu0 %v157
    %191 = vmatpush.msra.mxu0 %v156
    %192 = vmatmul.f32.gmra.mxu0 %v155
    %v193 = vpop.f32.mrf.mxu0
    %v194 = vadd.f32 %v174, %v193
    %195 = vdwg.mxu0
    %v196 = vmax.f32 %v194, 0.0
    %v197 = vld [vmem:[#allocation7] sm:$0xff]
    %v198 = vld [vmem:[#allocation7 + $0x8] sm:$0xff]
    %v199 = vld [vmem:[#allocation7 + $0x10] sm:$0xff]
    %v200 = vld [vmem:[#allocation7 + $0x18] sm:$0xff]
    %v201 = vld [vmem:[#allocation7 + $0x20] sm:$0xff]
    %v202 = vld [vmem:[#allocation7 + $0x28] sm:$0xff]
    %v203 = vld [vmem:[#allocation7 + $0x30] sm:$0xff]
    %v204 = vld [vmem:[#allocation7 + $0x38] sm:$0xff]
    %v205 = vld [vmem:[#allocation7 + $0x40] sm:$0xff]
    %v206 = vld [vmem:[#allocation7 + $0x48] sm:$0xff]
    %v207 = vld [vmem:[#allocation7 + $0x50] sm:$0xff]
    %v208 = vld [vmem:[#allocation7 + $0x58] sm:$0xff]
    %v209 = vld [vmem:[#allocation7 + $0x60] sm:$0xff]
    %v210 = vld [vmem:[#allocation7 + $0x68] sm:$0xff]
    %v211 = vld [vmem:[#allocation7 + $0x70] sm:$0xff]
    %v212 = vld [vmem:[#allocation7 + $0x78] sm:$0xff]
    %v213 = vld [vmem:[%s4] sm:$0x1]
    %v215 = vperm.slane %v213, 0
    %217 = vmatpush.msra.mxu0 %v212
    %218 = vmatpush.msra.mxu0 %v211
    %219 = vmatpush.msra.mxu0 %v210
    %220 = vmatpush.msra.mxu0 %v209
    %221 = vmatpush.msra.mxu0 %v208
    %222 = vmatpush.msra.mxu0 %v207
    %223 = vmatpush.msra.mxu0 %v206
    %224 = vmatpush.msra.mxu0 %v205
    %225 = vmatpush.msra.mxu0 %v204
    %226 = vmatpush.msra.mxu0 %v203
    %227 = vmatpush.msra.mxu0 %v202
    %228 = vmatpush.msra.mxu0 %v201
    %229 = vmatpush.msra.mxu0 %v200
    %230 = vmatpush.msra.mxu0 %v199
    %231 = vmatpush.msra.mxu0 %v198
    %232 = vmatpush.msra.mxu0 %v197
    %233 = vmatmul.f32.gmra.mxu0 %v196
    %v234 = vpop.f32.mrf.mxu0
    %v235 = vadd.f32 %v215, %v234
    %236 = vdwg.mxu0
    %v237 = vmax.f32 %v235, 0.0
    %v238 = vld [vmem:[#allocation8] sm:$0xff]
    %v239 = vld [vmem:[#allocation8 + $0x8] sm:$0xff]
    %v240 = vld [vmem:[#allocation8 + $0x10] sm:$0xff]
    %v241 = vld [vmem:[#allocation8 + $0x18] sm:$0xff]
    %v242 = vld [vmem:[#allocation8 + $0x20] sm:$0xff]
    %v243 = vld [vmem:[#allocation8 + $0x28] sm:$0xff]
    %v244 = vld [vmem:[#allocation8 + $0x30] sm:$0xff]
    %v245 = vld [vmem:[#allocation8 + $0x38] sm:$0xff]
    %v246 = vld [vmem:[#allocation8 + $0x40] sm:$0xff]
    %v247 = vld [vmem:[#allocation8 + $0x48] sm:$0xff]
    %v248 = vld [vmem:[#allocation8 + $0x50] sm:$0xff]
    %v249 = vld [vmem:[#allocation8 + $0x58] sm:$0xff]
    %v250 = vld [vmem:[#allocation8 + $0x60] sm:$0xff]
    %v251 = vld [vmem:[#allocation8 + $0x68] sm:$0xff]
    %v252 = vld [vmem:[#allocation8 + $0x70] sm:$0xff]
    %v253 = vld [vmem:[#allocation8 + $0x78] sm:$0xff]
    %v254 = vld [vmem:[%s6] sm:$0x1]
    %v256 = vperm.slane %v254, 0
    %258 = vmatpush.msra.mxu0 %v253
    %259 = vmatpush.msra.mxu0 %v252
    %260 = vmatpush.msra.mxu0 %v251
    %261 = vmatpush.msra.mxu0 %v250
    %262 = vmatpush.msra.mxu0 %v249
    %263 = vmatpush.msra.mxu0 %v248
    %264 = vmatpush.msra.mxu0 %v247
    %265 = vmatpush.msra.mxu0 %v246
    %266 = vmatpush.msra.mxu0 %v245
    %267 = vmatpush.msra.mxu0 %v244
    %268 = vmatpush.msra.mxu0 %v243
    %269 = vmatpush.msra.mxu0 %v242
    %270 = vmatpush.msra.mxu0 %v241
    %271 = vmatpush.msra.mxu0 %v240
    %272 = vmatpush.msra.mxu0 %v239
    %273 = vmatpush.msra.mxu0 %v238
    %274 = vmatmul.f32.gmra.mxu0 %v237
    %v275 = vpop.f32.mrf.mxu0
    %v276 = vadd.f32 %v256, %v275
    %277 = vdwg.mxu0
    %278 = vst [vmem:[#allocation14] sm:$0xff] %v276
    %v279 = vld [vmem:[#allocation10] sm:$0xff]
    %v280 = vld [vmem:[#allocation10 + $0x8] sm:$0xff]
    %v281 = vld [vmem:[#allocation10 + $0x10] sm:$0xff]
    %v282 = vld [vmem:[#allocation10 + $0x18] sm:$0xff]
    %v283 = vld [vmem:[#allocation10 + $0x20] sm:$0xff]
    %v284 = vld [vmem:[#allocation10 + $0x28] sm:$0xff]
    %v285 = vld [vmem:[#allocation10 + $0x30] sm:$0xff]
    %v286 = vld [vmem:[#allocation10 + $0x38] sm:$0xff]
    %v287 = vld [vmem:[#allocation10 + $0x40] sm:$0xff]
    %v288 = vld [vmem:[#allocation10 + $0x48] sm:$0xff]
    %v289 = vld [vmem:[#allocation10 + $0x50] sm:$0xff]
    %v290 = vld [vmem:[#allocation10 + $0x58] sm:$0xff]
    %v291 = vld [vmem:[#allocation10 + $0x60] sm:$0xff]
    %v292 = vld [vmem:[#allocation10 + $0x68] sm:$0xff]
    %v293 = vld [vmem:[#allocation10 + $0x70] sm:$0xff]
    %v294 = vld [vmem:[#allocation10 + $0x78] sm:$0xff]
    %v295 = vld [vmem:[%s8] sm:$0x1]
    %v297 = vperm.slane %v295, 0
    %299 = vmatpush.msra.mxu0 %v294
    %300 = vmatpush.msra.mxu0 %v293
    %301 = vmatpush.msra.mxu0 %v292
    %302 = vmatpush.msra.mxu0 %v291
    %303 = vmatpush.msra.mxu0 %v290
    %304 = vmatpush.msra.mxu0 %v289
    %305 = vmatpush.msra.mxu0 %v288
    %306 = vmatpush.msra.mxu0 %v287
    %307 = vmatpush.msra.mxu0 %v286
    %308 = vmatpush.msra.mxu0 %v285
    %309 = vmatpush.msra.mxu0 %v284
    %310 = vmatpush.msra.mxu0 %v283
    %311 = vmatpush.msra.mxu0 %v282
    %312 = vmatpush.msra.mxu0 %v281
    %313 = vmatpush.msra.mxu0 %v280
    %314 = vmatpush.msra.mxu0 %v279
    %315 = vmatmul.f32.gmra.mxu0 %v276
    %v316 = vpop.f32.mrf.mxu0
    %v317 = vadd.f32 %v297, %v316
    %318 = vdwg.mxu0
    %v319 = vmax.f32 %v317, 0.0
    %v320 = vld [vmem:[#allocation11] sm:$0xff]
    %v321 = vld [vmem:[#allocation11 + $0x8] sm:$0xff]
    %v322 = vld [vmem:[#allocation11 + $0x10] sm:$0xff]
    %v323 = vld [vmem:[#allocation11 + $0x18] sm:$0xff]
    %v324 = vld [vmem:[#allocation11 + $0x20] sm:$0xff]
    %v325 = vld [vmem:[#allocation11 + $0x28] sm:$0xff]
    %v326 = vld [vmem:[#allocation11 + $0x30] sm:$0xff]
    %v327 = vld [vmem:[#allocation11 + $0x38] sm:$0xff]
    %v328 = vld [vmem:[#allocation11 + $0x40] sm:$0xff]
    %v329 = vld [vmem:[#allocation11 + $0x48] sm:$0xff]
    %v330 = vld [vmem:[#allocation11 + $0x50] sm:$0xff]
    %v331 = vld [vmem:[#allocation11 + $0x58] sm:$0xff]
    %v332 = vld [vmem:[#allocation11 + $0x60] sm:$0xff]
    %v333 = vld [vmem:[#allocation11 + $0x68] sm:$0xff]
    %v334 = vld [vmem:[#allocation11 + $0x70] sm:$0xff]
    %v335 = vld [vmem:[#allocation11 + $0x78] sm:$0xff]
    %v336 = vld [vmem:[%s10] sm:$0x1]
    %v338 = vperm.slane %v336, 0
    %340 = vmatpush.msra.mxu0 %v335
    %341 = vmatpush.msra.mxu0 %v334
    %342 = vmatpush.msra.mxu0 %v333
    %343 = vmatpush.msra.mxu0 %v332
    %344 = vmatpush.msra.mxu0 %v331
    %345 = vmatpush.msra.mxu0 %v330
    %346 = vmatpush.msra.mxu0 %v329
    %347 = vmatpush.msra.mxu0 %v328
    %348 = vmatpush.msra.mxu0 %v327
    %349 = vmatpush.msra.mxu0 %v326
    %350 = vmatpush.msra.mxu0 %v325
    %351 = vmatpush.msra.mxu0 %v324
    %352 = vmatpush.msra.mxu0 %v323
    %353 = vmatpush.msra.mxu0 %v322
    %354 = vmatpush.msra.mxu0 %v321
    %355 = vmatpush.msra.mxu0 %v320
    %356 = vmatmul.f32.gmra.mxu0 %v319
    %v357 = vpop.f32.mrf.mxu0
    %v358 = vadd.f32 %v338, %v357
    %359 = vdwg.mxu0
    %v360 = vmax.f32 %v358, 0.0
    %v361 = vld [vmem:[#allocation13] sm:$0xff]
    %v362 = vld [vmem:[#allocation13 + $0x8] sm:$0xff]
    %v363 = vld [vmem:[#allocation13 + $0x10] sm:$0xff]
    %v364 = vld [vmem:[#allocation13 + $0x18] sm:$0xff]
    %v365 = vld [vmem:[#allocation13 + $0x20] sm:$0xff]
    %v366 = vld [vmem:[#allocation13 + $0x28] sm:$0xff]
    %v367 = vld [vmem:[#allocation13 + $0x30] sm:$0xff]
    %v368 = vld [vmem:[#allocation13 + $0x38] sm:$0xff]
    %v369 = vld [vmem:[#allocation13 + $0x40] sm:$0xff]
    %v370 = vld [vmem:[#allocation13 + $0x48] sm:$0xff]
    %v371 = vld [vmem:[#allocation13 + $0x50] sm:$0xff]
    %v372 = vld [vmem:[#allocation13 + $0x58] sm:$0xff]
    %v373 = vld [vmem:[#allocation13 + $0x60] sm:$0xff]
    %v374 = vld [vmem:[#allocation13 + $0x68] sm:$0xff]
    %v375 = vld [vmem:[#allocation13 + $0x70] sm:$0xff]
    %v376 = vld [vmem:[#allocation13 + $0x78] sm:$0xff]
    %v377 = vld [vmem:[%s12] sm:$0x1]
    %v379 = vperm.slane %v377, 0
    %381 = vmatpush.msra.mxu0 %v376
    %382 = vmatpush.msra.mxu0 %v375
    %383 = vmatpush.msra.mxu0 %v374
    %384 = vmatpush.msra.mxu0 %v373
    %385 = vmatpush.msra.mxu0 %v372
    %386 = vmatpush.msra.mxu0 %v371
    %387 = vmatpush.msra.mxu0 %v370
    %388 = vmatpush.msra.mxu0 %v369
    %389 = vmatpush.msra.mxu0 %v368
    %390 = vmatpush.msra.mxu0 %v367
    %391 = vmatpush.msra.mxu0 %v366
    %392 = vmatpush.msra.mxu0 %v365
    %393 = vmatpush.msra.mxu0 %v364
    %394 = vmatpush.msra.mxu0 %v363
    %395 = vmatpush.msra.mxu0 %v362
    %396 = vmatpush.msra.mxu0 %v361
    %397 = vmatmul.f32.gmra.mxu0 %v360
    %v398 = vpop.f32.mrf.mxu0
    %v399 = vadd.f32 %v379, %v398
    %400 = vdwg.mxu0
    %v401 = vtanh.pop %v399
    %402 = vst [vmem:[#allocation15] sm:$0xff] %v401
    // Predicated region
    $region82: #{tpu_custom_call.1} parent=1 // pred_check
      _
    $region83: #{tpu_custom_call.1} parent=1 // pred_check_branch
      %404 = sbr.rel (0) target = $region85
    $region84: #{tpu_custom_call.1} parent=1 // pred_region
      %406 = vsyncadd [#allocation4], 0
      %s408 = sshll.u32 [#allocation14], 4
      %s409 = int_to_ptr.vmem [resolvable:$true] %s408
      %s410 = sshll.u32 %s13, 4
      %s411 = int_to_ptr.hbm [resolvable:$true] %s410
      %413 = dma.vmem_to_hbm [thread:$0]  %s409, 128, %s411, [#allocation4]
    $region85: #{tpu_custom_call.1} parent=1 // pred_fallthru
      _
    // Predicated region
    $region86: #{tpu_custom_call.1} parent=1 // pred_check
      _
    $region87: #{tpu_custom_call.1} parent=1 // pred_check_branch
      %415 = sbr.rel (0) target = $region89
    $region88: #{tpu_custom_call.1} parent=1 // pred_region
      %417 = vsyncadd [#allocation16], 0
      %s419 = sshll.u32 [#allocation15], 4
      %s420 = int_to_ptr.vmem [resolvable:$true] %s419
      %s421 = sshll.u32 %s14, 4
      %s422 = int_to_ptr.hbm [resolvable:$true] %s421
      %424 = dma.vmem_to_hbm [thread:$0]  %s420, 128, %s422, [#allocation16]
    $region89: #{tpu_custom_call.1} parent=1 // pred_fallthru
      _
    // Predicated region
    $region90: #{tpu_custom_call.1} parent=1 // pred_check
      _
    $region91: #{tpu_custom_call.1} parent=1 // pred_check_branch
      %426 = sbr.rel (0) target = $region93
    $region92: #{tpu_custom_call.1} parent=1 // pred_region
      %428 = dma.done [#allocation4], 128
    $region93: #{tpu_custom_call.1} parent=1 // pred_fallthru
      _
    // Predicated region
    $region94: #{tpu_custom_call.1} parent=1 // pred_check
      _
    $region95: #{tpu_custom_call.1} parent=1 // pred_check_branch
      %430 = sbr.rel (0) target = $region97
    $region96: #{tpu_custom_call.1} parent=1 // pred_region
      %432 = dma.done [#allocation16], 128
    $region97: #{tpu_custom_call.1} parent=1 // pred_fallthru
      _
    %433 = vsyncpa [#allocation3], 1
    %434 = vsyncpa [#allocation6], 1
    %435 = vsyncpa [#allocation9], 1
    %436 = vsyncpa [#allocation12], 1
    %437 = vsyncpa [#allocation4], 1
    %438 = vsyncpa [#allocation16], 1

</llo_original>
